<compile_context>
chip_gen: v6e
topology: v6e:2x2x1
jax: 0.10.0
libtpu: 0.0.40
codegen_flags: <defaults>
</compile_context>

<pallas_src>
import functools

import numpy as np
import jax
import jax.numpy as jnp
from jax.experimental import pallas as pl
from jax.experimental.pallas import tpu as pltpu

# ---- model dimensions (from the module __init__) ----
F_IN = 121     # gin1 in_features
F_PAD = 128    # lane-padded feature width used inside the kernel
H = 64         # hidden width (gin1/gin2 out_features, pooling in_features)
K = 1          # number of clusters in MinCutPooling(64, 64, 1)
EPS1 = 0.0     # GIN eps, initialized to 0 (folded into A_hat in the wrapper)
EPS2 = 0.0


def _fused_kernel(A_ref, x_ref, m_ref,
                  w1_ref, b1_ref, w2_ref, b2_ref, wl_ref, bl_ref,
                  out_ref, *, bb, n):
    """One grid step = one block of `bb` graphs flattened to M = bb * n rows.

    A_ref : (M, M)   bf16 block-diagonal adjacency, (1 + eps) on the diagonal
    x_ref : (M, 128) f32 node features, zero-padded 121 -> 128
    m_ref : (M, 64)  bf16 masks[:, :, :64]
    out_ref: (bb, 1) one scalar per graph in the block
    """
    A = A_ref[...].astype(jnp.float32)      # {0,1,2}: bit-exact in bf16, cheap upcast
    x = x_ref[...]
    mask = m_ref[...].astype(jnp.float32)   # {0,1}: bit-exact in bf16

    # --- GIN layer 1 + ReLU + mask ---
    agg1 = jnp.dot(A, x, preferred_element_type=jnp.float32)                # (M, 128)
    h1 = jnp.dot(agg1, w1_ref[...], preferred_element_type=jnp.float32) + b1_ref[...]
    h1 = jnp.maximum(h1, 0.0) * mask                                        # (M, 64)

    # --- GIN layer 2 + ReLU + mask ---
    agg2 = jnp.dot(A, h1, preferred_element_type=jnp.float32)               # (M, 64)
    h2 = jnp.dot(agg2, w2_ref[...], preferred_element_type=jnp.float32) + b2_ref[...]
    h2 = jnp.maximum(h2, 0.0) * mask                                        # (M, 64)

    # --- MinCut pooling, K = 1: softmax over a length-1 cluster axis == 1, so
    # S^T @ X is a per-graph sum over nodes.  The reshape splits the sublane
    # axis on a multiple of 8 (tile-aligned view) and the node sum runs on the
    # XLU, replacing the old pooling-matrix DMA + degenerate MXU matmul.
    pooled = jnp.sum(h2.reshape(bb, n, H), axis=1)                          # (bb, 64)

    # --- final Linear(64, 1): VPU multiply + lane reduce (no 1-column MXU op).
    out = jnp.sum(pooled * wl_ref[...], axis=-1, keepdims=True) + bl_ref[...]  # (bb, 1)
    out_ref[...] = out


def toy_mincut_forward(A, x, masks, params, *, graphs_per_block=None):
    """A: (B, N, N), x: (B, N, 121), masks: (B, N, 121) -> (B, 1, 1)."""
    B, N, _ = A.shape
    w1, b1, w2, b2, wp, bp, wl, bl = params  # wp/bp unused: softmax over K=1 == 1

    # Guards for the algebraic shortcuts baked into the kernel.
    assert K == 1, "K=1 softmax shortcut requires a single cluster"
    assert EPS1 == 0.0 and EPS2 == 0.0, \
        "a single shared A_hat serves both GIN layers only because eps1 == eps2 == 0"

    if graphs_per_block is None:
        # Target M = BB*N = 128 rows per step: lane-full tiles and a full
        # 128-deep MXU contraction on every generation (v5e sweet spot).
        # On v6e/v7x pass graphs_per_block = 256 // N when the batch allows,
        # keeping >= 2 grid steps on v7x so both TensorCores are used.
        graphs_per_block = max(1, min(B, max(1, 128 // N)))
    BB = graphs_per_block
    B_pad = ((B + BB - 1) // BB) * BB
    nblk = B_pad // BB
    M = BB * N

    # Fold the (1 + eps) * I self-term into the adjacency (eps1 == eps2 == 0).
    A_hat = A + (1.0 + EPS1) * jnp.eye(N, dtype=A.dtype)[None]

    if B_pad != B:  # pad batch to a multiple of BB (fake graphs output bl; sliced off)
        pad = [(0, B_pad - B), (0, 0), (0, 0)]
        A_hat = jnp.pad(A_hat, pad)
        x = jnp.pad(x, pad)
        masks = jnp.pad(masks, pad)

    # Zero-pad features 121 -> 128 (and matching rows of W1): correctness-neutral.
    x_p = jnp.pad(x, ((0, 0), (0, 0), (0, F_PAD - F_IN)))
    w1_p = jnp.pad(w1, ((0, F_PAD - F_IN), (0, 0)))

    # Block-diagonalize BB graphs per grid step -> (nblk, M, M), shipped as
    # bf16: a 0/1 adjacency plus the +1 self-loop is bit-exact in bf16, and
    # A_bd is the largest per-step operand (block-diag inflation is BB-fold).
    A_blk = A_hat.reshape(nblk, BB, N, N)
    A_bd = jnp.einsum("gbij,bc->gbicj", A_blk, jnp.eye(BB, dtype=A.dtype))
    A_bd = A_bd.reshape(nblk, M, M).astype(jnp.bfloat16)

    x_blk = x_p.reshape(nblk, M, F_PAD)
    m_blk = masks[:, :, :H].reshape(nblk, M, H).astype(jnp.bfloat16)  # 0/1: exact

    wl_row = wl.reshape(1, H)  # (64, 1) -> (1, 64) for the VPU mul + lane reduce

    def const(shape):
        # Constant block index -> weight DMA'd once, stays VMEM-resident.
        return pl.BlockSpec(shape, lambda b: tuple(0 for _ in shape))

    grid_spec = pltpu.PrefetchScalarGridSpec(
        num_scalar_prefetch=0,
        grid=(nblk,),
        in_specs=[
            pl.BlockSpec((None, M, M), lambda b: (b, 0, 0)),      # block-diag A_hat (bf16)
            pl.BlockSpec((None, M, F_PAD), lambda b: (b, 0, 0)),  # x (f32, lane-padded)
            pl.BlockSpec((None, M, H), lambda b: (b, 0, 0)),      # masks[:, :, :64] (bf16)
            const((F_PAD, H)), const((1, H)),                     # gin1 W, b
            const((H, H)), const((1, H)),                         # gin2 W, b
            const((1, H)), const((1, 1)),                         # final linear W^T, b
        ],
        out_specs=pl.BlockSpec((None, BB, 1), lambda b: (b, 0, 0)),
    )

    out = pl.pallas_call(
        functools.partial(_fused_kernel, bb=BB, n=N),
        out_shape=jax.ShapeDtypeStruct((nblk, BB, 1), jnp.float32),
        grid_spec=grid_spec,
        compiler_params=pltpu.CompilerParams(
            dimension_semantics=("parallel",)),  # megacore on v7x when nblk >= 2
    )(A_bd, x_blk, m_blk, w1_p, b1, w2, b2, wl_row, bl)

    return out.reshape(B_pad, K, 1)[:B]


def ref_forward(A, x, masks, params):
    """Pure-JAX reference with the module's exact semantics (incl. K=1 softmax)."""
    w1, b1, w2, b2, wp, bp, wl, bl = params
    h = jnp.einsum("bij,bjf->bif", A, x) + (1.0 + EPS1) * x
    h = jax.nn.relu(h @ w1 + b1)
    h = h * masks[:, :, :h.shape[-1]]
    h2 = jnp.einsum("bij,bjf->bif", A, h) + (1.0 + EPS2) * h
    h2 = jax.nn.relu(h2 @ w2 + b2)
    h2 = h2 * masks[:, :, :h2.shape[-1]]
    s = jax.nn.softmax(h2 @ wp + bp, axis=-1)      # (B, N, 1) -> identically 1
    x_pool = jnp.einsum("bnk,bnf->bkf", s, h2)     # (B, 1, 64)
    return x_pool @ wl + bl                        # (B, 1, 1)


def make_params(key):
    ks = jax.random.split(key, 8)
    scale = 0.05
    w1 = scale * jax.random.normal(ks[0], (F_IN, H), jnp.float32)
    b1 = scale * jax.random.normal(ks[1], (1, H), jnp.float32)
    w2 = scale * jax.random.normal(ks[2], (H, H), jnp.float32)
    b2 = scale * jax.random.normal(ks[3], (1, H), jnp.float32)
    wp = scale * jax.random.normal(ks[4], (H, K), jnp.float32)
    bp = scale * jax.random.normal(ks[5], (1, K), jnp.float32)
    wl = scale * jax.random.normal(ks[6], (H, 1), jnp.float32)
    bl = scale * jax.random.normal(ks[7], (1, 1), jnp.float32)
    return (w1, b1, w2, b2, wp, bp, wl, bl)


if __name__ == "__main__":
    key = jax.random.PRNGKey(0)
    kA, kx, km, kp = jax.random.split(key, 4)

    B, N = 16, 8                                 # 16 small graphs, 8 nodes each
    # symmetric 0/1 adjacency with self-loops
    A_rand = jax.random.uniform(kA, (B, N, N), jnp.float32)
    A = ((A_rand + jnp.swapaxes(A_rand, 1, 2)) * 0.5 > 0.5).astype(jnp.float32)
    A = jnp.maximum(A, jnp.eye(N, dtype=jnp.float32)[None])
    x = jax.random.normal(kx, (B, N, F_IN), jnp.float32)
    masks = (jax.random.uniform(km, (B, N, F_IN)) > 0.2).astype(jnp.float32)

    params = make_params(kp)

    # Jit the whole wrapper so the prep (A_hat, batch pad, block-diag einsum,
    # 121->128 pad, bf16 casts) fuses into a few XLA ops; at these toy sizes
    # the end-to-end wall would otherwise be wrapper-bound, not kernel-bound.
    fwd = jax.jit(toy_mincut_forward, static_argnames=("graphs_per_block",))
    out = jax.block_until_ready(fwd(A, x, masks, params))

    # Reference in full f32 matmul precision so the f32 kernel comparison is tight.
    with jax.default_matmul_precision("highest"):
        expected = ref_forward(A, x, masks, params)

    assert out.shape == (B, K, 1), out.shape
    np.testing.assert_allclose(np.asarray(out), np.asarray(expected),
                               rtol=1e-5, atol=1e-4)
    print("KERNEL_OK")
</pallas_src>

<mosaic_0001>
module attributes {stable_mosaic.version = 11 : i64} {
  func.func @_fused_kernel(%arg0: i32, %arg1: memref<1x128x128xbf16, #tpu.memory_space<vmem>>, %arg2: memref<1x128x128xf32, #tpu.memory_space<vmem>>, %arg3: memref<1x128x64xbf16, #tpu.memory_space<vmem>>, %arg4: memref<128x64xf32, #tpu.memory_space<vmem>>, %arg5: memref<1x64xf32, #tpu.memory_space<vmem>>, %arg6: memref<64x64xf32, #tpu.memory_space<vmem>>, %arg7: memref<1x64xf32, #tpu.memory_space<vmem>>, %arg8: memref<1x64xf32, #tpu.memory_space<vmem>>, %arg9: memref<1x1xf32, #tpu.memory_space<vmem>>, %arg10: memref<1x16x1xf32, #tpu.memory_space<vmem>>) attributes {dimension_semantics = [#tpu.dimension_semantics<parallel>], iteration_bounds = array<i64: 1>, scalar_prefetch = 0 : i64, scratch_operands = 0 : i64, tpu.core_type = #tpu.core_type<tc>, window_params = [{transform_indices = @transform_0, window_bounds = array<i64: 1, 128, 128>}, {transform_indices = @transform_1, window_bounds = array<i64: 1, 128, 128>}, {transform_indices = @transform_2, window_bounds = array<i64: 1, 128, 64>}, {pipeline_mode = #tpu.pipeline_mode<synchronous>, transform_indices = @transform_3, window_bounds = array<i64: 128, 64>}, {pipeline_mode = #tpu.pipeline_mode<synchronous>, transform_indices = @transform_4, window_bounds = array<i64: 1, 64>}, {pipeline_mode = #tpu.pipeline_mode<synchronous>, transform_indices = @transform_5, window_bounds = array<i64: 64, 64>}, {pipeline_mode = #tpu.pipeline_mode<synchronous>, transform_indices = @transform_6, window_bounds = array<i64: 1, 64>}, {pipeline_mode = #tpu.pipeline_mode<synchronous>, transform_indices = @transform_7, window_bounds = array<i64: 1, 64>}, {pipeline_mode = #tpu.pipeline_mode<synchronous>, transform_indices = @transform_8, window_bounds = array<i64: 1, 1>}, {transform_indices = @transform_9, window_bounds = array<i64: 1, 16, 1>}]} {
    %c0 = arith.constant 0 : index
    %c0_0 = arith.constant 0 : index
    %c0_1 = arith.constant 0 : index
    %0 = vector.load %arg1[%c0, %c0_0, %c0_1] : memref<1x128x128xbf16, #tpu.memory_space<vmem>>, vector<1x128x128xbf16>
    %1 = vector.shape_cast %0 : vector<1x128x128xbf16> to vector<128x128xbf16>
    %2 = arith.extf %1 : vector<128x128xbf16> to vector<128x128xf32>
    %c0_2 = arith.constant 0 : index
    %c0_3 = arith.constant 0 : index
    %c0_4 = arith.constant 0 : index
    %3 = vector.load %arg2[%c0_2, %c0_3, %c0_4] : memref<1x128x128xf32, #tpu.memory_space<vmem>>, vector<1x128x128xf32>
    %4 = vector.shape_cast %3 : vector<1x128x128xf32> to vector<128x128xf32>
    %c0_5 = arith.constant 0 : index
    %c0_6 = arith.constant 0 : index
    %c0_7 = arith.constant 0 : index
    %5 = vector.load %arg3[%c0_5, %c0_6, %c0_7] : memref<1x128x64xbf16, #tpu.memory_space<vmem>>, vector<1x128x64xbf16>
    %6 = vector.shape_cast %5 : vector<1x128x64xbf16> to vector<128x64xbf16>
    %7 = arith.extf %6 : vector<128x64xbf16> to vector<128x64xf32>
    %cst = arith.constant dense<0.000000e+00> : vector<128x128xf32>
    %8 = tpu.matmul %2, %4, %cst {dimension_numbers = #tpu.dot_dimension_numbers<[1], [0], [0], [1], [0, 0, 1, 1], [], []>} : vector<128x128xf32>, vector<128x128xf32>, vector<128x128xf32> -> vector<128x128xf32>
    %c0_8 = arith.constant 0 : index
    %c0_9 = arith.constant 0 : index
    %9 = vector.load %arg4[%c0_8, %c0_9] : memref<128x64xf32, #tpu.memory_space<vmem>>, vector<128x64xf32>
    %cst_10 = arith.constant dense<0.000000e+00> : vector<128x64xf32>
    %10 = tpu.matmul %8, %9, %cst_10 {dimension_numbers = #tpu.dot_dimension_numbers<[1], [0], [0], [1], [0, 0, 1, 1], [], []>} : vector<128x128xf32>, vector<128x64xf32>, vector<128x64xf32> -> vector<128x64xf32>
    %c0_11 = arith.constant 0 : index
    %c0_12 = arith.constant 0 : index
    %11 = vector.load %arg5[%c0_11, %c0_12] : memref<1x64xf32, #tpu.memory_space<vmem>>, vector<1x64xf32>
    %12 = vector.broadcast %11 : vector<1x64xf32> to vector<128x64xf32>
    %13 = arith.addf %10, %12 : vector<128x64xf32>
    %cst_13 = arith.constant 0.000000e+00 : f32
    %14 = vector.broadcast %cst_13 : f32 to vector<128x64xf32>
    %15 = arith.maximumf %13, %14 : vector<128x64xf32>
    %16 = arith.mulf %15, %7 : vector<128x64xf32>
    %cst_14 = arith.constant dense<0.000000e+00> : vector<128x64xf32>
    %17 = tpu.matmul %2, %16, %cst_14 {dimension_numbers = #tpu.dot_dimension_numbers<[1], [0], [0], [1], [0, 0, 1, 1], [], []>} : vector<128x128xf32>, vector<128x64xf32>, vector<128x64xf32> -> vector<128x64xf32>
    %c0_15 = arith.constant 0 : index
    %c0_16 = arith.constant 0 : index
    %18 = vector.load %arg6[%c0_15, %c0_16] : memref<64x64xf32, #tpu.memory_space<vmem>>, vector<64x64xf32>
    %cst_17 = arith.constant dense<0.000000e+00> : vector<128x64xf32>
    %19 = tpu.matmul %17, %18, %cst_17 {dimension_numbers = #tpu.dot_dimension_numbers<[1], [0], [0], [1], [0, 0, 1, 1], [], []>} : vector<128x64xf32>, vector<64x64xf32>, vector<128x64xf32> -> vector<128x64xf32>
    %c0_18 = arith.constant 0 : index
    %c0_19 = arith.constant 0 : index
    %20 = vector.load %arg7[%c0_18, %c0_19] : memref<1x64xf32, #tpu.memory_space<vmem>>, vector<1x64xf32>
    %21 = vector.broadcast %20 : vector<1x64xf32> to vector<128x64xf32>
    %22 = arith.addf %19, %21 : vector<128x64xf32>
    %cst_20 = arith.constant 0.000000e+00 : f32
    %23 = vector.broadcast %cst_20 : f32 to vector<128x64xf32>
    %24 = arith.maximumf %22, %23 : vector<128x64xf32>
    %25 = arith.mulf %24, %7 : vector<128x64xf32>
    %26 = vector.shape_cast %25 : vector<128x64xf32> to vector<16x8x64xf32>
    %cst_21 = arith.constant dense<0.000000e+00> : vector<16x64xf32>
    %27 = vector.multi_reduction <add>, %26, %cst_21 [1] : vector<16x8x64xf32> to vector<16x64xf32>
    %c0_22 = arith.constant 0 : index
    %c0_23 = arith.constant 0 : index
    %28 = vector.load %arg8[%c0_22, %c0_23] : memref<1x64xf32, #tpu.memory_space<vmem>>, vector<1x64xf32>
    %29 = vector.broadcast %28 : vector<1x64xf32> to vector<16x64xf32>
    %30 = arith.mulf %27, %29 : vector<16x64xf32>
    %cst_24 = arith.constant dense<0.000000e+00> : vector<16xf32>
    %31 = vector.multi_reduction <add>, %30, %cst_24 [1] : vector<16x64xf32> to vector<16xf32>
    %32 = vector.shape_cast %31 : vector<16xf32> to vector<16x1xf32>
    %c0_25 = arith.constant 0 : index
    %c0_26 = arith.constant 0 : index
    %33 = vector.load %arg9[%c0_25, %c0_26] : memref<1x1xf32, #tpu.memory_space<vmem>>, vector<1x1xf32>
    %34 = vector.broadcast %33 : vector<1x1xf32> to vector<16x1xf32>
    %35 = arith.addf %32, %34 : vector<16x1xf32>
    %c0_27 = arith.constant 0 : index
    %c0_28 = arith.constant 0 : index
    %c0_29 = arith.constant 0 : index
    %36 = vector.load %arg10[%c0_27, %c0_28, %c0_29] : memref<1x16x1xf32, #tpu.memory_space<vmem>>, vector<1x16x1xf32>
    %37 = vector.shape_cast %36 : vector<1x16x1xf32> to vector<16x1xf32>
    %38 = vector.shape_cast %35 : vector<16x1xf32> to vector<1x16x1xf32>
    tpu.vector_store %arg10[%c0_27, %c0_28, %c0_29], %38 {strides = array<i32>} : memref<1x16x1xf32, #tpu.memory_space<vmem>>, vector<1x16x1xf32>,
    return
  }
  func.func @transform_0(%arg0: i32) -> (i32, i32, i32) {
    %c0_i32 = arith.constant 0 : i32
    %c0_i32_0 = arith.constant 0 : i32
    %c0_i32_1 = arith.constant 0 : i32
    return %arg0, %c0_i32, %c0_i32_0 : i32, i32, i32
  }
  func.func @transform_1(%arg0: i32) -> (i32, i32, i32) {
    %c0_i32 = arith.constant 0 : i32
    %c0_i32_0 = arith.constant 0 : i32
    %c0_i32_1 = arith.constant 0 : i32
    return %arg0, %c0_i32, %c0_i32_0 : i32, i32, i32
  }
  func.func @transform_2(%arg0: i32) -> (i32, i32, i32) {
    %c0_i32 = arith.constant 0 : i32
    %c0_i32_0 = arith.constant 0 : i32
    %c0_i32_1 = arith.constant 0 : i32
    return %arg0, %c0_i32, %c0_i32_0 : i32, i32, i32
  }
  func.func @transform_3(%arg0: i32) -> (i32, i32) {
    %c0_i32 = arith.constant 0 : i32
    %c0_i32_0 = arith.constant 0 : i32
    %c0_i32_1 = arith.constant 0 : i32
    return %c0_i32, %c0_i32_0 : i32, i32
  }
  func.func @transform_4(%arg0: i32) -> (i32, i32) {
    %c0_i32 = arith.constant 0 : i32
    %c0_i32_0 = arith.constant 0 : i32
    %c0_i32_1 = arith.constant 0 : i32
    return %c0_i32, %c0_i32_0 : i32, i32
  }
  func.func @transform_5(%arg0: i32) -> (i32, i32) {
    %c0_i32 = arith.constant 0 : i32
    %c0_i32_0 = arith.constant 0 : i32
    %c0_i32_1 = arith.constant 0 : i32
    return %c0_i32, %c0_i32_0 : i32, i32
  }
  func.func @transform_6(%arg0: i32) -> (i32, i32) {
    %c0_i32 = arith.constant 0 : i32
    %c0_i32_0 = arith.constant 0 : i32
    %c0_i32_1 = arith.constant 0 : i32
    return %c0_i32, %c0_i32_0 : i32, i32
  }
  func.func @transform_7(%arg0: i32) -> (i32, i32) {
    %c0_i32 = arith.constant 0 : i32
    %c0_i32_0 = arith.constant 0 : i32
    %c0_i32_1 = arith.constant 0 : i32
    return %c0_i32, %c0_i32_0 : i32, i32
  }
  func.func @transform_8(%arg0: i32) -> (i32, i32) {
    %c0_i32 = arith.constant 0 : i32
    %c0_i32_0 = arith.constant 0 : i32
    %c0_i32_1 = arith.constant 0 : i32
    return %c0_i32, %c0_i32_0 : i32, i32
  }
  func.func @transform_9(%arg0: i32) -> (i32, i32, i32) {
    %c0_i32 = arith.constant 0 : i32
    %c0_i32_0 = arith.constant 0 : i32
    %c0_i32_1 = arith.constant 0 : i32
    return %arg0, %c0_i32, %c0_i32_0 : i32, i32, i32
  }
}

</mosaic_0001>

<llo_original>
// kernel: toy_mincut_forward.1
$region0: #{toy_mincut_forward.1}
  #allocation0 [shape = 'u32[]', space=smem, size = 0x4, offset = 0x4, fixed_abs, tag = 'smem constant byte address 0x4 - core index']
  #allocation1 [shape = 'u32[144,128]{1,0:T(1,128)}', space=vmem, size = 0x12000, scoped, tag = 'internal scratch']
  #allocation2 [shape = 'f32[1,1]{1,0:T(1,128)S(1)}', space=vmem, size = 0x200, scoped, tag = 'scoped memory for toy_mincut_forward.1']
  %s0 = inlined_call_operand.vmem [shape: bf16[1,128,128], index: 0, kind: input, shape index: {}]
  %s1 = inlined_call_operand.vmem [shape: f32[1,128,128], index: 1, kind: input, shape index: {}]
  %s2 = inlined_call_operand.vmem [shape: bf16[1,128,64], index: 2, kind: input, shape index: {}]
  %s3 = inlined_call_operand.vmem [shape: f32[128,64], index: 3, kind: input, shape index: {}]
  %s4 = inlined_call_operand.vmem [shape: f32[1,64], index: 4, kind: input, shape index: {}]
  %s5 = inlined_call_operand.vmem [shape: f32[64,64], index: 5, kind: input, shape index: {}]
  %s6 = inlined_call_operand.vmem [shape: f32[1,64], index: 6, kind: input, shape index: {}]
  %s7 = inlined_call_operand.vmem [shape: f32[1,64], index: 7, kind: input, shape index: {}]
  %s8 = inlined_call_operand.<no memory space> [shape: f32[1,1], index: 8, kind: input, shape index: {}]
  %s9 = inlined_call_operand.vmem [shape: f32[1,16,1], index: 9, kind: output, shape index: {}]
  %s10 = sld [smem:[#allocation0]]
  $region46: #{toy_mincut_forward.1} parent=0
    _
  %s12 = ssub.s32 1, %s10
  %s13 = scalar_select 0, %s12, %s10
  %v14 = vstv %s8
  %15 = vst [vmem:[#allocation2] sm:$0x1] %v14
  // Predicated region
  $region2: #{toy_mincut_forward.1} parent=0 // pred_check
    _
  $region3: #{toy_mincut_forward.1} parent=0 // pred_check_branch
    %17 = sbr.rel (0) target = $region5
  $region4: #{toy_mincut_forward.1} parent=0 // pred_region
    _
  $region5: #{toy_mincut_forward.1} parent=0 // pred_fallthru
    _
  // Predicated region
  $region6: #{toy_mincut_forward.1} parent=0 // pred_check
    _
  $region7: #{toy_mincut_forward.1} parent=0 // pred_check_branch
    %19 = sbr.rel (0) target = $region9
  $region8: #{toy_mincut_forward.1} parent=0 // pred_region
    _
  $region9: #{toy_mincut_forward.1} parent=0 // pred_fallthru
    _
  // Predicated region
  $region10: #{toy_mincut_forward.1} parent=0 // pred_check
    _
  $region11: #{toy_mincut_forward.1} parent=0 // pred_check_branch
    %21 = sbr.rel (0) target = $region13
  $region12: #{toy_mincut_forward.1} parent=0 // pred_region
    _
  $region13: #{toy_mincut_forward.1} parent=0 // pred_fallthru
    _
  // Predicated region
  $region14: #{toy_mincut_forward.1} parent=0 // pred_check
    _
  $region15: #{toy_mincut_forward.1} parent=0 // pred_check_branch
    %23 = sbr.rel (0) target = $region17
  $region16: #{toy_mincut_forward.1} parent=0 // pred_region
    _
  $region17: #{toy_mincut_forward.1} parent=0 // pred_fallthru
    _
  // Predicated region
  $region18: #{toy_mincut_forward.1} parent=0 // pred_check
    _
  $region19: #{toy_mincut_forward.1} parent=0 // pred_check_branch
    %25 = sbr.rel (0) target = $region21
  $region20: #{toy_mincut_forward.1} parent=0 // pred_region
    _
  $region21: #{toy_mincut_forward.1} parent=0 // pred_fallthru
    _
  // Predicated region
  $region22: #{toy_mincut_forward.1} parent=0 // pred_check
    _
  $region23: #{toy_mincut_forward.1} parent=0 // pred_check_branch
    %27 = sbr.rel (0) target = $region25
  $region24: #{toy_mincut_forward.1} parent=0 // pred_region
    _
  $region25: #{toy_mincut_forward.1} parent=0 // pred_fallthru
    _
  // Predicated region
  $region26: #{toy_mincut_forward.1} parent=0 // pred_check
    _
  $region27: #{toy_mincut_forward.1} parent=0 // pred_check_branch
    %29 = sbr.rel (0) target = $region29
  $region28: #{toy_mincut_forward.1} parent=0 // pred_region
    _
  $region29: #{toy_mincut_forward.1} parent=0 // pred_fallthru
    _
  // Predicated region
  $region30: #{toy_mincut_forward.1} parent=0 // pred_check
    _
  $region31: #{toy_mincut_forward.1} parent=0 // pred_check_branch
    %31 = sbr.rel (0) target = $region33
  $region32: #{toy_mincut_forward.1} parent=0 // pred_region
    _
  $region33: #{toy_mincut_forward.1} parent=0 // pred_fallthru
    _
  // Predicated region
  $region34: #{toy_mincut_forward.1} parent=0 // pred_check
    _
  $region35: #{toy_mincut_forward.1} parent=0 // pred_check_branch
    %33 = sbr.rel (0) target = $region37
  $region36: #{toy_mincut_forward.1} parent=0 // pred_region
    _
  $region37: #{toy_mincut_forward.1} parent=0 // pred_fallthru
    _
  %v34 = vld [vmem:[%s0] sm:$0xf]
  %v35 = vld [vmem:[%s0 + $0x4] sm:$0xf]
  %v36 = vld [vmem:[%s0 + $0x8] sm:$0xf]
  %v37 = vld [vmem:[%s0 + $0xc] sm:$0xf]
  %v38 = vld [vmem:[%s0 + $0x10] sm:$0xf]
  %v39 = vld [vmem:[%s0 + $0x14] sm:$0xf]
  %v40 = vld [vmem:[%s0 + $0x18] sm:$0xf]
  %v41 = vld [vmem:[%s0 + $0x1c] sm:$0xf]
  %v42 = vld [vmem:[%s0 + $0x20] sm:$0xf]
  %v43 = vld [vmem:[%s0 + $0x24] sm:$0xf]
  %v44 = vld [vmem:[%s0 + $0x28] sm:$0xf]
  %v45 = vld [vmem:[%s0 + $0x2c] sm:$0xf]
  %v46 = vld [vmem:[%s0 + $0x30] sm:$0xf]
  %v47 = vld [vmem:[%s0 + $0x34] sm:$0xf]
  %v48 = vld [vmem:[%s0 + $0x38] sm:$0xf]
  %v49 = vld [vmem:[%s0 + $0x3c] sm:$0xf]
  %v50 = vunpack.c.l.bf16 %v34
  %v51 = vunpack.c.l.bf16 %v35
  %v52 = vunpack.c.l.bf16 %v36
  %v53 = vunpack.c.l.bf16 %v37
  %v54 = vunpack.c.l.bf16 %v38
  %v55 = vunpack.c.l.bf16 %v39
  %v56 = vunpack.c.l.bf16 %v40
  %v57 = vunpack.c.l.bf16 %v41
  %v58 = vunpack.c.l.bf16 %v42
  %v59 = vunpack.c.l.bf16 %v43
  %v60 = vunpack.c.l.bf16 %v44
  %v61 = vunpack.c.l.bf16 %v45
  %v62 = vunpack.c.l.bf16 %v46
  %v63 = vunpack.c.l.bf16 %v47
  %v64 = vunpack.c.l.bf16 %v48
  %v65 = vunpack.c.l.bf16 %v49
  %v66 = vld [vmem:[%s1] sm:$0xff]
  %v67 = vld [vmem:[%s1 + $0x8] sm:$0xff]
  %v68 = vld [vmem:[%s1 + $0x10] sm:$0xff]
  %v69 = vld [vmem:[%s1 + $0x18] sm:$0xff]
  %v70 = vld [vmem:[%s1 + $0x20] sm:$0xff]
  %v71 = vld [vmem:[%s1 + $0x28] sm:$0xff]
  %v72 = vld [vmem:[%s1 + $0x30] sm:$0xff]
  %v73 = vld [vmem:[%s1 + $0x38] sm:$0xff]
  %v74 = vld [vmem:[%s1 + $0x40] sm:$0xff]
  %v75 = vld [vmem:[%s1 + $0x48] sm:$0xff]
  %v76 = vld [vmem:[%s1 + $0x50] sm:$0xff]
  %v77 = vld [vmem:[%s1 + $0x58] sm:$0xff]
  %v78 = vld [vmem:[%s1 + $0x60] sm:$0xff]
  %v79 = vld [vmem:[%s1 + $0x68] sm:$0xff]
  %v80 = vld [vmem:[%s1 + $0x70] sm:$0xff]
  %v81 = vld [vmem:[%s1 + $0x78] sm:$0xff]
  %v82 = vld [vmem:[%s2] sm:$0xf]
  %v83 = vld [vmem:[%s2 + $0x4] sm:$0xf]
  %v84 = vld [vmem:[%s2 + $0x8] sm:$0xf]
  %v85 = vld [vmem:[%s2 + $0xc] sm:$0xf]
  %v86 = vld [vmem:[%s2 + $0x10] sm:$0xf]
  %v87 = vld [vmem:[%s2 + $0x14] sm:$0xf]
  %v88 = vld [vmem:[%s2 + $0x18] sm:$0xf]
  %v89 = vld [vmem:[%s2 + $0x1c] sm:$0xf]
  %v90 = vld [vmem:[%s2 + $0x20] sm:$0xf]
  %v91 = vld [vmem:[%s2 + $0x24] sm:$0xf]
  %v92 = vld [vmem:[%s2 + $0x28] sm:$0xf]
  %v93 = vld [vmem:[%s2 + $0x2c] sm:$0xf]
  %v94 = vld [vmem:[%s2 + $0x30] sm:$0xf]
  %v95 = vld [vmem:[%s2 + $0x34] sm:$0xf]
  %v96 = vld [vmem:[%s2 + $0x38] sm:$0xf]
  %v97 = vld [vmem:[%s2 + $0x3c] sm:$0xf]
  %v98 = vunpack.c.l.bf16 %v82
  %v99 = vunpack.c.l.bf16 %v83
  %v100 = vunpack.c.l.bf16 %v84
  %v101 = vunpack.c.l.bf16 %v85
  %v102 = vunpack.c.l.bf16 %v86
  %v103 = vunpack.c.l.bf16 %v87
  %v104 = vunpack.c.l.bf16 %v88
  %v105 = vunpack.c.l.bf16 %v89
  %v106 = vunpack.c.l.bf16 %v90
  %v107 = vunpack.c.l.bf16 %v91
  %v108 = vunpack.c.l.bf16 %v92
  %v109 = vunpack.c.l.bf16 %v93
  %v110 = vunpack.c.l.bf16 %v94
  %v111 = vunpack.c.l.bf16 %v95
  %v112 = vunpack.c.l.bf16 %v96
  %v113 = vunpack.c.l.bf16 %v97
  %114 = vmatprep.subr.mxu0 0.0
  %115 = vmatpush1.msra.mxu0 %v81
  %116 = vmatprep.subr.mxu0 0.0
  %117 = vmatpush1.msra.mxu0 %v80
  %118 = vmatprep.subr.mxu0 0.0
  %119 = vmatpush1.msra.mxu0 %v79
  %120 = vmatprep.subr.mxu0 0.0
  %121 = vmatpush1.msra.mxu0 %v78
  %122 = vmatprep.subr.mxu0 0.0
  %123 = vmatpush1.msra.mxu0 %v77
  %124 = vmatprep.subr.mxu0 0.0
  %125 = vmatpush1.msra.mxu0 %v76
  %126 = vmatprep.subr.mxu0 0.0
  %127 = vmatpush1.msra.mxu0 %v75
  %128 = vmatprep.subr.mxu0 0.0
  %129 = vmatpush1.msra.mxu0 %v74
  %130 = vmatprep.subr.mxu0 0.0
  %131 = vmatpush1.msra.mxu0 %v73
  %132 = vmatprep.subr.mxu0 0.0
  %133 = vmatpush1.msra.mxu0 %v72
  %134 = vmatprep.subr.mxu0 0.0
  %135 = vmatpush1.msra.mxu0 %v71
  %136 = vmatprep.subr.mxu0 0.0
  %137 = vmatpush1.msra.mxu0 %v70
  %138 = vmatprep.subr.mxu0 0.0
  %139 = vmatpush1.msra.mxu0 %v69
  %140 = vmatprep.subr.mxu0 0.0
  %141 = vmatpush1.msra.mxu0 %v68
  %142 = vmatprep.subr.mxu0 0.0
  %143 = vmatpush1.msra.mxu0 %v67
  %144 = vmatprep.subr.mxu0 0.0
  %145 = vmatpush1.msra.mxu0 %v66
  %146 = vmatprep.subr.mxu0 0.0
  %147 = vmatpush2.msra.mxu0 0.0
  %148 = vmatprep.subr.mxu0 0.0
  %149 = vmatpush2.msra.mxu0 0.0
  %150 = vmatprep.subr.mxu0 0.0
  %151 = vmatpush2.msra.mxu0 0.0
  %152 = vmatprep.subr.mxu0 0.0
  %153 = vmatpush2.msra.mxu0 0.0
  %154 = vmatprep.subr.mxu0 0.0
  %155 = vmatpush2.msra.mxu0 0.0
  %156 = vmatprep.subr.mxu0 0.0
  %157 = vmatpush2.msra.mxu0 0.0
  %158 = vmatprep.subr.mxu0 0.0
  %159 = vmatpush2.msra.mxu0 0.0
  %160 = vmatprep.subr.mxu0 0.0
  %161 = vmatpush2.msra.mxu0 0.0
  %162 = vmatprep.subr.mxu0 0.0
  %163 = vmatpush2.msra.mxu0 0.0
  %164 = vmatprep.subr.mxu0 0.0
  %165 = vmatpush2.msra.mxu0 0.0
  %166 = vmatprep.subr.mxu0 0.0
  %167 = vmatpush2.msra.mxu0 0.0
  %168 = vmatprep.subr.mxu0 0.0
  %169 = vmatpush2.msra.mxu0 0.0
  %170 = vmatprep.subr.mxu0 0.0
  %171 = vmatpush2.msra.mxu0 0.0
  %172 = vmatprep.subr.mxu0 0.0
  %173 = vmatpush2.msra.mxu0 0.0
  %174 = vmatprep.subr.mxu0 0.0
  %175 = vmatpush2.msra.mxu0 0.0
  %176 = vmatprep.subr.mxu0 0.0
  %177 = vmatpush2.msra.mxu0 0.0
  %178 = vmatprep.mubr.f32.mxu0 0.0
  %179 = vmatmul.mubr.f32.gmra.mxu0 %v50
  %v180 = vpop.f32.mrf.mxu0
  %v181 = vadd.f32 0.0, %v180
  %v182 = vpop.f32.mrf.mxu0
  %183 = vmatprep.mubr.f32.mxu0 0.0
  %184 = vmatmul.mubr.f32.gmra.mxu0 %v51
  %v185 = vpop.f32.mrf.mxu0
  %v186 = vadd.f32 0.0, %v185
  %v187 = vpop.f32.mrf.mxu0
  %188 = vmatprep.mubr.f32.mxu0 0.0
  %189 = vmatmul.mubr.f32.gmra.mxu0 %v52
  %v190 = vpop.f32.mrf.mxu0
  %v191 = vadd.f32 0.0, %v190
  %v192 = vpop.f32.mrf.mxu0
  %193 = vmatprep.mubr.f32.mxu0 0.0
  %194 = vmatmul.mubr.f32.gmra.mxu0 %v53
  %v195 = vpop.f32.mrf.mxu0
  %v196 = vadd.f32 0.0, %v195
  %v197 = vpop.f32.mrf.mxu0
  %198 = vmatprep.mubr.f32.mxu0 0.0
  %199 = vmatmul.mubr.f32.gmra.mxu0 %v54
  %v200 = vpop.f32.mrf.mxu0
  %v201 = vadd.f32 0.0, %v200
  %v202 = vpop.f32.mrf.mxu0
  %203 = vmatprep.mubr.f32.mxu0 0.0
  %204 = vmatmul.mubr.f32.gmra.mxu0 %v55
  %v205 = vpop.f32.mrf.mxu0
  %v206 = vadd.f32 0.0, %v205
  %v207 = vpop.f32.mrf.mxu0
  %208 = vmatprep.mubr.f32.mxu0 0.0
  %209 = vmatmul.mubr.f32.gmra.mxu0 %v56
  %v210 = vpop.f32.mrf.mxu0
  %v211 = vadd.f32 0.0, %v210
  %v212 = vpop.f32.mrf.mxu0
  %213 = vmatprep.mubr.f32.mxu0 0.0
  %214 = vmatmul.mubr.f32.gmra.mxu0 %v57
  %v215 = vpop.f32.mrf.mxu0
  %v216 = vadd.f32 0.0, %v215
  %v217 = vpop.f32.mrf.mxu0
  %218 = vmatprep.mubr.f32.mxu0 0.0
  %219 = vmatmul.mubr.f32.gmra.mxu0 %v58
  %v220 = vpop.f32.mrf.mxu0
  %v221 = vadd.f32 0.0, %v220
  %v222 = vpop.f32.mrf.mxu0
  %223 = vmatprep.mubr.f32.mxu0 0.0
  %224 = vmatmul.mubr.f32.gmra.mxu0 %v59
  %v225 = vpop.f32.mrf.mxu0
  %v226 = vadd.f32 0.0, %v225
  %v227 = vpop.f32.mrf.mxu0
  %228 = vmatprep.mubr.f32.mxu0 0.0
  %229 = vmatmul.mubr.f32.gmra.mxu0 %v60
  %v230 = vpop.f32.mrf.mxu0
  %v231 = vadd.f32 0.0, %v230
  %v232 = vpop.f32.mrf.mxu0
  %233 = vmatprep.mubr.f32.mxu0 0.0
  %234 = vmatmul.mubr.f32.gmra.mxu0 %v61
  %v235 = vpop.f32.mrf.mxu0
  %v236 = vadd.f32 0.0, %v235
  %v237 = vpop.f32.mrf.mxu0
  %238 = vmatprep.mubr.f32.mxu0 0.0
  %239 = vmatmul.mubr.f32.gmra.mxu0 %v62
  %v240 = vpop.f32.mrf.mxu0
  %v241 = vadd.f32 0.0, %v240
  %v242 = vpop.f32.mrf.mxu0
  %243 = vmatprep.mubr.f32.mxu0 0.0
  %244 = vmatmul.mubr.f32.gmra.mxu0 %v63
  %v245 = vpop.f32.mrf.mxu0
  %v246 = vadd.f32 0.0, %v245
  %v247 = vpop.f32.mrf.mxu0
  %248 = vmatprep.mubr.f32.mxu0 0.0
  %249 = vmatmul.mubr.f32.gmra.mxu0 %v64
  %v250 = vpop.f32.mrf.mxu0
  %v251 = vadd.f32 0.0, %v250
  %v252 = vpop.f32.mrf.mxu0
  %253 = vmatprep.mubr.f32.mxu0 0.0
  %254 = vmatmul.mubr.f32.gmra.mxu0 %v65
  %v255 = vpop.f32.mrf.mxu0
  %v256 = vadd.f32 0.0, %v255
  %v257 = vpop.f32.mrf.mxu0
  %258 = vdwg.mxu0
  %v259 = vld [vmem:[%s3] sm:$0xff]
  %v260 = vld [vmem:[%s3 + $0x8] sm:$0xff]
  %v261 = vld [vmem:[%s3 + $0x10] sm:$0xff]
  %v262 = vld [vmem:[%s3 + $0x18] sm:$0xff]
  %v263 = vld [vmem:[%s3 + $0x20] sm:$0xff]
  %v264 = vld [vmem:[%s3 + $0x28] sm:$0xff]
  %v265 = vld [vmem:[%s3 + $0x30] sm:$0xff]
  %v266 = vld [vmem:[%s3 + $0x38] sm:$0xff]
  %v267 = vld [vmem:[%s3 + $0x40] sm:$0xff]
  %v268 = vld [vmem:[%s3 + $0x48] sm:$0xff]
  %v269 = vld [vmem:[%s3 + $0x50] sm:$0xff]
  %v270 = vld [vmem:[%s3 + $0x58] sm:$0xff]
  %v271 = vld [vmem:[%s3 + $0x60] sm:$0xff]
  %v272 = vld [vmem:[%s3 + $0x68] sm:$0xff]
  %v273 = vld [vmem:[%s3 + $0x70] sm:$0xff]
  %v274 = vld [vmem:[%s3 + $0x78] sm:$0xff]
  %v275 = vld [vmem:[%s4] sm:$0x1]
  %v277 = vlaneseq
  %v278 = vshrl.u32 %v277, 7
  %v279 = vsub.s32 0, %v278
  %v280 = vrot.slane %v275, %v279
  %282 = vmatprep.subr.mxu0 0.0
  %283 = vmatpush1.msra.mxu0 %v274
  %284 = vmatprep.subr.mxu0 0.0
  %285 = vmatpush1.msra.mxu0 %v273
  %286 = vmatprep.subr.mxu0 0.0
  %287 = vmatpush1.msra.mxu0 %v272
  %288 = vmatprep.subr.mxu0 0.0
  %289 = vmatpush1.msra.mxu0 %v271
  %290 = vmatprep.subr.mxu0 0.0
  %291 = vmatpush1.msra.mxu0 %v270
  %292 = vmatprep.subr.mxu0 0.0
  %293 = vmatpush1.msra.mxu0 %v269
  %294 = vmatprep.subr.mxu0 0.0
  %295 = vmatpush1.msra.mxu0 %v268
  %296 = vmatprep.subr.mxu0 0.0
  %297 = vmatpush1.msra.mxu0 %v267
  %298 = vmatprep.subr.mxu0 0.0
  %299 = vmatpush1.msra.mxu0 %v266
  %300 = vmatprep.subr.mxu0 0.0
  %301 = vmatpush1.msra.mxu0 %v265
  %302 = vmatprep.subr.mxu0 0.0
  %303 = vmatpush1.msra.mxu0 %v264
  %304 = vmatprep.subr.mxu0 0.0
  %305 = vmatpush1.msra.mxu0 %v263
  %306 = vmatprep.subr.mxu0 0.0
  %307 = vmatpush1.msra.mxu0 %v262
  %308 = vmatprep.subr.mxu0 0.0
  %309 = vmatpush1.msra.mxu0 %v261
  %310 = vmatprep.subr.mxu0 0.0
  %311 = vmatpush1.msra.mxu0 %v260
  %312 = vmatprep.subr.mxu0 0.0
  %313 = vmatpush1.msra.mxu0 %v259
  %314 = vmatprep.subr.mxu0 0.0
  %315 = vmatpush2.msra.mxu0 0.0
  %316 = vmatprep.subr.mxu0 0.0
  %317 = vmatpush2.msra.mxu0 0.0
  %318 = vmatprep.subr.mxu0 0.0
  %319 = vmatpush2.msra.mxu0 0.0
  %320 = vmatprep.subr.mxu0 0.0
  %321 = vmatpush2.msra.mxu0 0.0
  %322 = vmatprep.subr.mxu0 0.0
  %323 = vmatpush2.msra.mxu0 0.0
  %324 = vmatprep.subr.mxu0 0.0
  %325 = vmatpush2.msra.mxu0 0.0
  %326 = vmatprep.subr.mxu0 0.0
  %327 = vmatpush2.msra.mxu0 0.0
  %328 = vmatprep.subr.mxu0 0.0
  %329 = vmatpush2.msra.mxu0 0.0
  %330 = vmatprep.subr.mxu0 0.0
  %331 = vmatpush2.msra.mxu0 0.0
  %332 = vmatprep.subr.mxu0 0.0
  %333 = vmatpush2.msra.mxu0 0.0
  %334 = vmatprep.subr.mxu0 0.0
  %335 = vmatpush2.msra.mxu0 0.0
  %336 = vmatprep.subr.mxu0 0.0
  %337 = vmatpush2.msra.mxu0 0.0
  %338 = vmatprep.subr.mxu0 0.0
  %339 = vmatpush2.msra.mxu0 0.0
  %340 = vmatprep.subr.mxu0 0.0
  %341 = vmatpush2.msra.mxu0 0.0
  %342 = vmatprep.subr.mxu0 0.0
  %343 = vmatpush2.msra.mxu0 0.0
  %344 = vmatprep.subr.mxu0 0.0
  %345 = vmatpush2.msra.mxu0 0.0
  %346 = vmatprep.mubr.f32.mxu0 0.0
  %347 = vmatmul.mubr.f32.gmra.mxu0 %v181
  %v348 = vpop.f32.mrf.mxu0
  %v349 = vadd.f32 %v280, %v348
  %v350 = vpop.f32.mrf.mxu0
  %351 = vmatprep.mubr.f32.mxu0 0.0
  %352 = vmatmul.mubr.f32.gmra.mxu0 %v186
  %v353 = vpop.f32.mrf.mxu0
  %v354 = vadd.f32 %v280, %v353
  %v355 = vpop.f32.mrf.mxu0
  %356 = vmatprep.mubr.f32.mxu0 0.0
  %357 = vmatmul.mubr.f32.gmra.mxu0 %v191
  %v358 = vpop.f32.mrf.mxu0
  %v359 = vadd.f32 %v280, %v358
  %v360 = vpop.f32.mrf.mxu0
  %361 = vmatprep.mubr.f32.mxu0 0.0
  %362 = vmatmul.mubr.f32.gmra.mxu0 %v196
  %v363 = vpop.f32.mrf.mxu0
  %v364 = vadd.f32 %v280, %v363
  %v365 = vpop.f32.mrf.mxu0
  %366 = vmatprep.mubr.f32.mxu0 0.0
  %367 = vmatmul.mubr.f32.gmra.mxu0 %v201
  %v368 = vpop.f32.mrf.mxu0
  %v369 = vadd.f32 %v280, %v368
  %v370 = vpop.f32.mrf.mxu0
  %371 = vmatprep.mubr.f32.mxu0 0.0
  %372 = vmatmul.mubr.f32.gmra.mxu0 %v206
  %v373 = vpop.f32.mrf.mxu0
  %v374 = vadd.f32 %v280, %v373
  %v375 = vpop.f32.mrf.mxu0
  %376 = vmatprep.mubr.f32.mxu0 0.0
  %377 = vmatmul.mubr.f32.gmra.mxu0 %v211
  %v378 = vpop.f32.mrf.mxu0
  %v379 = vadd.f32 %v280, %v378
  %v380 = vpop.f32.mrf.mxu0
  %381 = vmatprep.mubr.f32.mxu0 0.0
  %382 = vmatmul.mubr.f32.gmra.mxu0 %v216
  %v383 = vpop.f32.mrf.mxu0
  %v384 = vadd.f32 %v280, %v383
  %v385 = vpop.f32.mrf.mxu0
  %386 = vmatprep.mubr.f32.mxu0 0.0
  %387 = vmatmul.mubr.f32.gmra.mxu0 %v221
  %v388 = vpop.f32.mrf.mxu0
  %v389 = vadd.f32 %v280, %v388
  %v390 = vpop.f32.mrf.mxu0
  %391 = vmatprep.mubr.f32.mxu0 0.0
  %392 = vmatmul.mubr.f32.gmra.mxu0 %v226
  %v393 = vpop.f32.mrf.mxu0
  %v394 = vadd.f32 %v280, %v393
  %v395 = vpop.f32.mrf.mxu0
  %396 = vmatprep.mubr.f32.mxu0 0.0
  %397 = vmatmul.mubr.f32.gmra.mxu0 %v231
  %v398 = vpop.f32.mrf.mxu0
  %v399 = vadd.f32 %v280, %v398
  %v400 = vpop.f32.mrf.mxu0
  %401 = vmatprep.mubr.f32.mxu0 0.0
  %402 = vmatmul.mubr.f32.gmra.mxu0 %v236
  %v403 = vpop.f32.mrf.mxu0
  %v404 = vadd.f32 %v280, %v403
  %v405 = vpop.f32.mrf.mxu0
  %406 = vmatprep.mubr.f32.mxu0 0.0
  %407 = vmatmul.mubr.f32.gmra.mxu0 %v241
  %v408 = vpop.f32.mrf.mxu0
  %v409 = vadd.f32 %v280, %v408
  %v410 = vpop.f32.mrf.mxu0
  %411 = vmatprep.mubr.f32.mxu0 0.0
  %412 = vmatmul.mubr.f32.gmra.mxu0 %v246
  %v413 = vpop.f32.mrf.mxu0
  %v414 = vadd.f32 %v280, %v413
  %v415 = vpop.f32.mrf.mxu0
  %416 = vmatprep.mubr.f32.mxu0 0.0
  %417 = vmatmul.mubr.f32.gmra.mxu0 %v251
  %v418 = vpop.f32.mrf.mxu0
  %v419 = vadd.f32 %v280, %v418
  %v420 = vpop.f32.mrf.mxu0
  %421 = vmatprep.mubr.f32.mxu0 0.0
  %422 = vmatmul.mubr.f32.gmra.mxu0 %v256
  %v423 = vpop.f32.mrf.mxu0
  %v424 = vadd.f32 %v280, %v423
  %v425 = vpop.f32.mrf.mxu0
  %426 = vdwg.mxu0
  %v427 = vmax.f32 %v349, 0.0
  %v428 = vmax.f32 %v354, 0.0
  %v429 = vmax.f32 %v359, 0.0
  %v430 = vmax.f32 %v364, 0.0
  %v431 = vmax.f32 %v369, 0.0
  %v432 = vmax.f32 %v374, 0.0
  %v433 = vmax.f32 %v379, 0.0
  %v434 = vmax.f32 %v384, 0.0
  %v435 = vmax.f32 %v389, 0.0
  %v436 = vmax.f32 %v394, 0.0
  %v437 = vmax.f32 %v399, 0.0
  %v438 = vmax.f32 %v404, 0.0
  %v439 = vmax.f32 %v409, 0.0
  %v440 = vmax.f32 %v414, 0.0
  %v441 = vmax.f32 %v419, 0.0
  %v442 = vmax.f32 %v424, 0.0
  %v443 = vmul.f32 %v427, %v98
  %v444 = vmul.f32 %v428, %v99
  %v445 = vmul.f32 %v429, %v100
  %v446 = vmul.f32 %v430, %v101
  %v447 = vmul.f32 %v431, %v102
  %v448 = vmul.f32 %v432, %v103
  %v449 = vmul.f32 %v433, %v104
  %v450 = vmul.f32 %v434, %v105
  %v451 = vmul.f32 %v435, %v106
  %v452 = vmul.f32 %v436, %v107
  %v453 = vmul.f32 %v437, %v108
  %v454 = vmul.f32 %v438, %v109
  %v455 = vmul.f32 %v439, %v110
  %v456 = vmul.f32 %v440, %v111
  %v457 = vmul.f32 %v441, %v112
  %v458 = vmul.f32 %v442, %v113
  %459 = vmatprep.subr.mxu0 0.0
  %460 = vmatpush1.msra.mxu0 %v458
  %461 = vmatprep.subr.mxu0 0.0
  %462 = vmatpush1.msra.mxu0 %v457
  %463 = vmatprep.subr.mxu0 0.0
  %464 = vmatpush1.msra.mxu0 %v456
  %465 = vmatprep.subr.mxu0 0.0
  %466 = vmatpush1.msra.mxu0 %v455
  %467 = vmatprep.subr.mxu0 0.0
  %468 = vmatpush1.msra.mxu0 %v454
  %469 = vmatprep.subr.mxu0 0.0
  %470 = vmatpush1.msra.mxu0 %v453
  %471 = vmatprep.subr.mxu0 0.0
  %472 = vmatpush1.msra.mxu0 %v452
  %473 = vmatprep.subr.mxu0 0.0
  %474 = vmatpush1.msra.mxu0 %v451
  %475 = vmatprep.subr.mxu0 0.0
  %476 = vmatpush1.msra.mxu0 %v450
  %477 = vmatprep.subr.mxu0 0.0
  %478 = vmatpush1.msra.mxu0 %v449
  %479 = vmatprep.subr.mxu0 0.0
  %480 = vmatpush1.msra.mxu0 %v448
  %481 = vmatprep.subr.mxu0 0.0
  %482 = vmatpush1.msra.mxu0 %v447
  %483 = vmatprep.subr.mxu0 0.0
  %484 = vmatpush1.msra.mxu0 %v446
  %485 = vmatprep.subr.mxu0 0.0
  %486 = vmatpush1.msra.mxu0 %v445
  %487 = vmatprep.subr.mxu0 0.0
  %488 = vmatpush1.msra.mxu0 %v444
  %489 = vmatprep.subr.mxu0 0.0
  %490 = vmatpush1.msra.mxu0 %v443
  %491 = vmatprep.subr.mxu0 0.0
  %492 = vmatpush2.msra.mxu0 0.0
  %493 = vmatprep.subr.mxu0 0.0
  %494 = vmatpush2.msra.mxu0 0.0
  %495 = vmatprep.subr.mxu0 0.0
  %496 = vmatpush2.msra.mxu0 0.0
  %497 = vmatprep.subr.mxu0 0.0
  %498 = vmatpush2.msra.mxu0 0.0
  %499 = vmatprep.subr.mxu0 0.0
  %500 = vmatpush2.msra.mxu0 0.0
  %501 = vmatprep.subr.mxu0 0.0
  %502 = vmatpush2.msra.mxu0 0.0
  %503 = vmatprep.subr.mxu0 0.0
  %504 = vmatpush2.msra.mxu0 0.0
  %505 = vmatprep.subr.mxu0 0.0
  %506 = vmatpush2.msra.mxu0 0.0
  %507 = vmatprep.subr.mxu0 0.0
  %508 = vmatpush2.msra.mxu0 0.0
  %509 = vmatprep.subr.mxu0 0.0
  %510 = vmatpush2.msra.mxu0 0.0
  %511 = vmatprep.subr.mxu0 0.0
  %512 = vmatpush2.msra.mxu0 0.0
  %513 = vmatprep.subr.mxu0 0.0
  %514 = vmatpush2.msra.mxu0 0.0
  %515 = vmatprep.subr.mxu0 0.0
  %516 = vmatpush2.msra.mxu0 0.0
  %517 = vmatprep.subr.mxu0 0.0
  %518 = vmatpush2.msra.mxu0 0.0
  %519 = vmatprep.subr.mxu0 0.0
  %520 = vmatpush2.msra.mxu0 0.0
  %521 = vmatprep.subr.mxu0 0.0
  %522 = vmatpush2.msra.mxu0 0.0
  %523 = vmatprep.mubr.f32.mxu0 0.0
  %524 = vmatmul.mubr.f32.gmra.mxu0 %v50
  %v525 = vpop.f32.mrf.mxu0
  %v526 = vadd.f32 0.0, %v525
  %v527 = vpop.f32.mrf.mxu0
  %528 = vmatprep.mubr.f32.mxu0 0.0
  %529 = vmatmul.mubr.f32.gmra.mxu0 %v51
  %v530 = vpop.f32.mrf.mxu0
  %v531 = vadd.f32 0.0, %v530
  %v532 = vpop.f32.mrf.mxu0
  %533 = vmatprep.mubr.f32.mxu0 0.0
  %534 = vmatmul.mubr.f32.gmra.mxu0 %v52
  %v535 = vpop.f32.mrf.mxu0
  %v536 = vadd.f32 0.0, %v535
  %v537 = vpop.f32.mrf.mxu0
  %538 = vmatprep.mubr.f32.mxu0 0.0
  %539 = vmatmul.mubr.f32.gmra.mxu0 %v53
  %v540 = vpop.f32.mrf.mxu0
  %v541 = vadd.f32 0.0, %v540
  %v542 = vpop.f32.mrf.mxu0
  %543 = vmatprep.mubr.f32.mxu0 0.0
  %544 = vmatmul.mubr.f32.gmra.mxu0 %v54
  %v545 = vpop.f32.mrf.mxu0
  %v546 = vadd.f32 0.0, %v545
  %v547 = vpop.f32.mrf.mxu0
  %548 = vmatprep.mubr.f32.mxu0 0.0
  %549 = vmatmul.mubr.f32.gmra.mxu0 %v55
  %v550 = vpop.f32.mrf.mxu0
  %v551 = vadd.f32 0.0, %v550
  %v552 = vpop.f32.mrf.mxu0
  %553 = vmatprep.mubr.f32.mxu0 0.0
  %554 = vmatmul.mubr.f32.gmra.mxu0 %v56
  %v555 = vpop.f32.mrf.mxu0
  %v556 = vadd.f32 0.0, %v555
  %v557 = vpop.f32.mrf.mxu0
  %558 = vmatprep.mubr.f32.mxu0 0.0
  %559 = vmatmul.mubr.f32.gmra.mxu0 %v57
  %v560 = vpop.f32.mrf.mxu0
  %v561 = vadd.f32 0.0, %v560
  %v562 = vpop.f32.mrf.mxu0
  %563 = vmatprep.mubr.f32.mxu0 0.0
  %564 = vmatmul.mubr.f32.gmra.mxu0 %v58
  %v565 = vpop.f32.mrf.mxu0
  %v566 = vadd.f32 0.0, %v565
  %v567 = vpop.f32.mrf.mxu0
  %568 = vmatprep.mubr.f32.mxu0 0.0
  %569 = vmatmul.mubr.f32.gmra.mxu0 %v59
  %v570 = vpop.f32.mrf.mxu0
  %v571 = vadd.f32 0.0, %v570
  %v572 = vpop.f32.mrf.mxu0
  %573 = vmatprep.mubr.f32.mxu0 0.0
  %574 = vmatmul.mubr.f32.gmra.mxu0 %v60
  %v575 = vpop.f32.mrf.mxu0
  %v576 = vadd.f32 0.0, %v575
  %v577 = vpop.f32.mrf.mxu0
  %578 = vmatprep.mubr.f32.mxu0 0.0
  %579 = vmatmul.mubr.f32.gmra.mxu0 %v61
  %v580 = vpop.f32.mrf.mxu0
  %v581 = vadd.f32 0.0, %v580
  %v582 = vpop.f32.mrf.mxu0
  %583 = vmatprep.mubr.f32.mxu0 0.0
  %584 = vmatmul.mubr.f32.gmra.mxu0 %v62
  %v585 = vpop.f32.mrf.mxu0
  %v586 = vadd.f32 0.0, %v585
  %v587 = vpop.f32.mrf.mxu0
  %588 = vmatprep.mubr.f32.mxu0 0.0
  %589 = vmatmul.mubr.f32.gmra.mxu0 %v63
  %v590 = vpop.f32.mrf.mxu0
  %v591 = vadd.f32 0.0, %v590
  %v592 = vpop.f32.mrf.mxu0
  %593 = vmatprep.mubr.f32.mxu0 0.0
  %594 = vmatmul.mubr.f32.gmra.mxu0 %v64
  %v595 = vpop.f32.mrf.mxu0
  %v596 = vadd.f32 0.0, %v595
  %v597 = vpop.f32.mrf.mxu0
  %598 = vmatprep.mubr.f32.mxu0 0.0
  %599 = vmatmul.mubr.f32.gmra.mxu0 %v65
  %v600 = vpop.f32.mrf.mxu0
  %v601 = vadd.f32 0.0, %v600
  %v602 = vpop.f32.mrf.mxu0
  %603 = vdwg.mxu0
  %v604 = vld [vmem:[%s5] sm:$0xff]
  %v605 = vld [vmem:[%s5 + $0x8] sm:$0xff]
  %v606 = vld [vmem:[%s5 + $0x10] sm:$0xff]
  %v607 = vld [vmem:[%s5 + $0x18] sm:$0xff]
  %v608 = vld [vmem:[%s5 + $0x20] sm:$0xff]
  %v609 = vld [vmem:[%s5 + $0x28] sm:$0xff]
  %v610 = vld [vmem:[%s5 + $0x30] sm:$0xff]
  %v611 = vld [vmem:[%s5 + $0x38] sm:$0xff]
  %v612 = vld [vmem:[%s6] sm:$0x1]
  %v614 = vlaneseq
  %v615 = vshrl.u32 %v614, 7
  %v616 = vsub.s32 0, %v615
  %v617 = vrot.slane %v612, %v616
  %vm619 = vcmask 523264
  %v621 = vsel %vm619, %v526, 0
  %v624 = vsel %vm619, %v531, 0
  %v627 = vsel %vm619, %v536, 0
  %v630 = vsel %vm619, %v541, 0
  %v633 = vsel %vm619, %v546, 0
  %v636 = vsel %vm619, %v551, 0
  %v639 = vsel %vm619, %v556, 0
  %v642 = vsel %vm619, %v561, 0
  %v645 = vsel %vm619, %v566, 0
  %v648 = vsel %vm619, %v571, 0
  %v651 = vsel %vm619, %v576, 0
  %v654 = vsel %vm619, %v581, 0
  %v657 = vsel %vm619, %v586, 0
  %v660 = vsel %vm619, %v591, 0
  %v663 = vsel %vm619, %v596, 0
  %v666 = vsel %vm619, %v601, 0
  %668 = vmatprep.subr.mxu0 0.0
  %669 = vmatpush1.msra.mxu0 0.0
  %670 = vmatprep.subr.mxu0 0.0
  %671 = vmatpush1.msra.mxu0 0.0
  %672 = vmatprep.subr.mxu0 0.0
  %673 = vmatpush1.msra.mxu0 0.0
  %674 = vmatprep.subr.mxu0 0.0
  %675 = vmatpush1.msra.mxu0 0.0
  %676 = vmatprep.subr.mxu0 0.0
  %677 = vmatpush1.msra.mxu0 0.0
  %678 = vmatprep.subr.mxu0 0.0
  %679 = vmatpush1.msra.mxu0 0.0
  %680 = vmatprep.subr.mxu0 0.0
  %681 = vmatpush1.msra.mxu0 0.0
  %682 = vmatprep.subr.mxu0 0.0
  %683 = vmatpush1.msra.mxu0 0.0
  %684 = vmatprep.subr.mxu0 0.0
  %685 = vmatpush1.msra.mxu0 %v611
  %686 = vmatprep.subr.mxu0 0.0
  %687 = vmatpush1.msra.mxu0 %v610
  %688 = vmatprep.subr.mxu0 0.0
  %689 = vmatpush1.msra.mxu0 %v609
  %690 = vmatprep.subr.mxu0 0.0
  %691 = vmatpush1.msra.mxu0 %v608
  %692 = vmatprep.subr.mxu0 0.0
  %693 = vmatpush1.msra.mxu0 %v607
  %694 = vmatprep.subr.mxu0 0.0
  %695 = vmatpush1.msra.mxu0 %v606
  %696 = vmatprep.subr.mxu0 0.0
  %697 = vmatpush1.msra.mxu0 %v605
  %698 = vmatprep.subr.mxu0 0.0
  %699 = vmatpush1.msra.mxu0 %v604
  %700 = vmatprep.subr.mxu0 0.0
  %701 = vmatpush2.msra.mxu0 0.0
  %702 = vmatprep.subr.mxu0 0.0
  %703 = vmatpush2.msra.mxu0 0.0
  %704 = vmatprep.subr.mxu0 0.0
  %705 = vmatpush2.msra.mxu0 0.0
  %706 = vmatprep.subr.mxu0 0.0
  %707 = vmatpush2.msra.mxu0 0.0
  %708 = vmatprep.subr.mxu0 0.0
  %709 = vmatpush2.msra.mxu0 0.0
  %710 = vmatprep.subr.mxu0 0.0
  %711 = vmatpush2.msra.mxu0 0.0
  %712 = vmatprep.subr.mxu0 0.0
  %713 = vmatpush2.msra.mxu0 0.0
  %714 = vmatprep.subr.mxu0 0.0
  %715 = vmatpush2.msra.mxu0 0.0
  %716 = vmatprep.subr.mxu0 0.0
  %717 = vmatpush2.msra.mxu0 0.0
  %718 = vmatprep.subr.mxu0 0.0
  %719 = vmatpush2.msra.mxu0 0.0
  %720 = vmatprep.subr.mxu0 0.0
  %721 = vmatpush2.msra.mxu0 0.0
  %722 = vmatprep.subr.mxu0 0.0
  %723 = vmatpush2.msra.mxu0 0.0
  %724 = vmatprep.subr.mxu0 0.0
  %725 = vmatpush2.msra.mxu0 0.0
  %726 = vmatprep.subr.mxu0 0.0
  %727 = vmatpush2.msra.mxu0 0.0
  %728 = vmatprep.subr.mxu0 0.0
  %729 = vmatpush2.msra.mxu0 0.0
  %730 = vmatprep.subr.mxu0 0.0
  %731 = vmatpush2.msra.mxu0 0.0
  %732 = vmatprep.mubr.f32.mxu0 0.0
  %733 = vmatmul.mubr.f32.gmra.mxu0 %v621
  %v734 = vpop.f32.mrf.mxu0
  %v735 = vadd.f32 %v617, %v734
  %v736 = vpop.f32.mrf.mxu0
  %737 = vmatprep.mubr.f32.mxu0 0.0
  %738 = vmatmul.mubr.f32.gmra.mxu0 %v624
  %v739 = vpop.f32.mrf.mxu0
  %v740 = vadd.f32 %v617, %v739
  %v741 = vpop.f32.mrf.mxu0
  %742 = vmatprep.mubr.f32.mxu0 0.0
  %743 = vmatmul.mubr.f32.gmra.mxu0 %v627
  %v744 = vpop.f32.mrf.mxu0
  %v745 = vadd.f32 %v617, %v744
  %v746 = vpop.f32.mrf.mxu0
  %747 = vmatprep.mubr.f32.mxu0 0.0
  %748 = vmatmul.mubr.f32.gmra.mxu0 %v630
  %v749 = vpop.f32.mrf.mxu0
  %v750 = vadd.f32 %v617, %v749
  %v751 = vpop.f32.mrf.mxu0
  %752 = vmatprep.mubr.f32.mxu0 0.0
  %753 = vmatmul.mubr.f32.gmra.mxu0 %v633
  %v754 = vpop.f32.mrf.mxu0
  %v755 = vadd.f32 %v617, %v754
  %v756 = vpop.f32.mrf.mxu0
  %757 = vmatprep.mubr.f32.mxu0 0.0
  %758 = vmatmul.mubr.f32.gmra.mxu0 %v636
  %v759 = vpop.f32.mrf.mxu0
  %v760 = vadd.f32 %v617, %v759
  %v761 = vpop.f32.mrf.mxu0
  %762 = vmatprep.mubr.f32.mxu0 0.0
  %763 = vmatmul.mubr.f32.gmra.mxu0 %v639
  %v764 = vpop.f32.mrf.mxu0
  %v765 = vadd.f32 %v617, %v764
  %v766 = vpop.f32.mrf.mxu0
  %767 = vmatprep.mubr.f32.mxu0 0.0
  %768 = vmatmul.mubr.f32.gmra.mxu0 %v642
  %v769 = vpop.f32.mrf.mxu0
  %v770 = vadd.f32 %v617, %v769
  %v771 = vpop.f32.mrf.mxu0
  %772 = vmatprep.mubr.f32.mxu0 0.0
  %773 = vmatmul.mubr.f32.gmra.mxu0 %v645
  %v774 = vpop.f32.mrf.mxu0
  %v775 = vadd.f32 %v617, %v774
  %v776 = vpop.f32.mrf.mxu0
  %777 = vmatprep.mubr.f32.mxu0 0.0
  %778 = vmatmul.mubr.f32.gmra.mxu0 %v648
  %v779 = vpop.f32.mrf.mxu0
  %v780 = vadd.f32 %v617, %v779
  %v781 = vpop.f32.mrf.mxu0
  %782 = vmatprep.mubr.f32.mxu0 0.0
  %783 = vmatmul.mubr.f32.gmra.mxu0 %v651
  %v784 = vpop.f32.mrf.mxu0
  %v785 = vadd.f32 %v617, %v784
  %v786 = vpop.f32.mrf.mxu0
  %787 = vmatprep.mubr.f32.mxu0 0.0
  %788 = vmatmul.mubr.f32.gmra.mxu0 %v654
  %v789 = vpop.f32.mrf.mxu0
  %v790 = vadd.f32 %v617, %v789
  %v791 = vpop.f32.mrf.mxu0
  %792 = vmatprep.mubr.f32.mxu0 0.0
  %793 = vmatmul.mubr.f32.gmra.mxu0 %v657
  %v794 = vpop.f32.mrf.mxu0
  %v795 = vadd.f32 %v617, %v794
  %v796 = vpop.f32.mrf.mxu0
  %797 = vmatprep.mubr.f32.mxu0 0.0
  %798 = vmatmul.mubr.f32.gmra.mxu0 %v660
  %v799 = vpop.f32.mrf.mxu0
  %v800 = vadd.f32 %v617, %v799
  %v801 = vpop.f32.mrf.mxu0
  %802 = vmatprep.mubr.f32.mxu0 0.0
  %803 = vmatmul.mubr.f32.gmra.mxu0 %v663
  %v804 = vpop.f32.mrf.mxu0
  %v805 = vadd.f32 %v617, %v804
  %v806 = vpop.f32.mrf.mxu0
  %807 = vmatprep.mubr.f32.mxu0 0.0
  %808 = vmatmul.mubr.f32.gmra.mxu0 %v666
  %v809 = vpop.f32.mrf.mxu0
  %v810 = vadd.f32 %v617, %v809
  %v811 = vpop.f32.mrf.mxu0
  %812 = vdwg.mxu0
  %v813 = vmax.f32 %v735, 0.0
  %v814 = vmax.f32 %v740, 0.0
  %v815 = vmax.f32 %v745, 0.0
  %v816 = vmax.f32 %v750, 0.0
  %v817 = vmax.f32 %v755, 0.0
  %v818 = vmax.f32 %v760, 0.0
  %v819 = vmax.f32 %v765, 0.0
  %v820 = vmax.f32 %v770, 0.0
  %v821 = vmax.f32 %v775, 0.0
  %v822 = vmax.f32 %v780, 0.0
  %v823 = vmax.f32 %v785, 0.0
  %v824 = vmax.f32 %v790, 0.0
  %v825 = vmax.f32 %v795, 0.0
  %v826 = vmax.f32 %v800, 0.0
  %v827 = vmax.f32 %v805, 0.0
  %v828 = vmax.f32 %v810, 0.0
  %v829 = vmul.f32 %v813, %v98
  %v830 = vmul.f32 %v814, %v99
  %v831 = vmul.f32 %v815, %v100
  %v832 = vmul.f32 %v816, %v101
  %v833 = vmul.f32 %v817, %v102
  %v834 = vmul.f32 %v818, %v103
  %v835 = vmul.f32 %v819, %v104
  %v836 = vmul.f32 %v820, %v105
  %v837 = vmul.f32 %v821, %v106
  %v838 = vmul.f32 %v822, %v107
  %v839 = vmul.f32 %v823, %v108
  %v840 = vmul.f32 %v824, %v109
  %v841 = vmul.f32 %v825, %v110
  %v842 = vmul.f32 %v826, %v111
  %v843 = vmul.f32 %v827, %v112
  %v844 = vmul.f32 %v828, %v113
  %v845 = vsel %vm619, %v829, 0.0
  %v846 = vrot.slane %v845, 4
  %v847 = vadd.f32 %v845, %v846
  %v848 = vrot.slane %v847, 2
  %v849 = vadd.f32 %v847, %v848
  %v850 = vrot.slane %v849, 1
  %v851 = vadd.f32 %v849, %v850
  %v852 = vsel %vm619, %v830, 0.0
  %v853 = vrot.slane %v852, 4
  %v854 = vadd.f32 %v852, %v853
  %v855 = vrot.slane %v854, 2
  %v856 = vadd.f32 %v854, %v855
  %v857 = vrot.slane %v856, 1
  %v858 = vadd.f32 %v856, %v857
  %v859 = vsel %vm619, %v831, 0.0
  %v860 = vrot.slane %v859, 4
  %v861 = vadd.f32 %v859, %v860
  %v862 = vrot.slane %v861, 2
  %v863 = vadd.f32 %v861, %v862
  %v864 = vrot.slane %v863, 1
  %v865 = vadd.f32 %v863, %v864
  %v866 = vsel %vm619, %v832, 0.0
  %v867 = vrot.slane %v866, 4
  %v868 = vadd.f32 %v866, %v867
  %v869 = vrot.slane %v868, 2
  %v870 = vadd.f32 %v868, %v869
  %v871 = vrot.slane %v870, 1
  %v872 = vadd.f32 %v870, %v871
  %v873 = vsel %vm619, %v833, 0.0
  %v874 = vrot.slane %v873, 4
  %v875 = vadd.f32 %v873, %v874
  %v876 = vrot.slane %v875, 2
  %v877 = vadd.f32 %v875, %v876
  %v878 = vrot.slane %v877, 1
  %v879 = vadd.f32 %v877, %v878
  %v880 = vsel %vm619, %v834, 0.0
  %v881 = vrot.slane %v880, 4
  %v882 = vadd.f32 %v880, %v881
  %v883 = vrot.slane %v882, 2
  %v884 = vadd.f32 %v882, %v883
  %v885 = vrot.slane %v884, 1
  %v886 = vadd.f32 %v884, %v885
  %v887 = vsel %vm619, %v835, 0.0
  %v888 = vrot.slane %v887, 4
  %v889 = vadd.f32 %v887, %v888
  %v890 = vrot.slane %v889, 2
  %v891 = vadd.f32 %v889, %v890
  %v892 = vrot.slane %v891, 1
  %v893 = vadd.f32 %v891, %v892
  %v894 = vsel %vm619, %v836, 0.0
  %v895 = vrot.slane %v894, 4
  %v896 = vadd.f32 %v894, %v895
  %v897 = vrot.slane %v896, 2
  %v898 = vadd.f32 %v896, %v897
  %v899 = vrot.slane %v898, 1
  %v900 = vadd.f32 %v898, %v899
  %v901 = vsel %vm619, %v837, 0.0
  %v902 = vrot.slane %v901, 4
  %v903 = vadd.f32 %v901, %v902
  %v904 = vrot.slane %v903, 2
  %v905 = vadd.f32 %v903, %v904
  %v906 = vrot.slane %v905, 1
  %v907 = vadd.f32 %v905, %v906
  %v908 = vsel %vm619, %v838, 0.0
  %v909 = vrot.slane %v908, 4
  %v910 = vadd.f32 %v908, %v909
  %v911 = vrot.slane %v910, 2
  %v912 = vadd.f32 %v910, %v911
  %v913 = vrot.slane %v912, 1
  %v914 = vadd.f32 %v912, %v913
  %v915 = vsel %vm619, %v839, 0.0
  %v916 = vrot.slane %v915, 4
  %v917 = vadd.f32 %v915, %v916
  %v918 = vrot.slane %v917, 2
  %v919 = vadd.f32 %v917, %v918
  %v920 = vrot.slane %v919, 1
  %v921 = vadd.f32 %v919, %v920
  %v922 = vsel %vm619, %v840, 0.0
  %v923 = vrot.slane %v922, 4
  %v924 = vadd.f32 %v922, %v923
  %v925 = vrot.slane %v924, 2
  %v926 = vadd.f32 %v924, %v925
  %v927 = vrot.slane %v926, 1
  %v928 = vadd.f32 %v926, %v927
  %v929 = vsel %vm619, %v841, 0.0
  %v930 = vrot.slane %v929, 4
  %v931 = vadd.f32 %v929, %v930
  %v932 = vrot.slane %v931, 2
  %v933 = vadd.f32 %v931, %v932
  %v934 = vrot.slane %v933, 1
  %v935 = vadd.f32 %v933, %v934
  %v936 = vsel %vm619, %v842, 0.0
  %v937 = vrot.slane %v936, 4
  %v938 = vadd.f32 %v936, %v937
  %v939 = vrot.slane %v938, 2
  %v940 = vadd.f32 %v938, %v939
  %v941 = vrot.slane %v940, 1
  %v942 = vadd.f32 %v940, %v941
  %v943 = vsel %vm619, %v843, 0.0
  %v944 = vrot.slane %v943, 4
  %v945 = vadd.f32 %v943, %v944
  %v946 = vrot.slane %v945, 2
  %v947 = vadd.f32 %v945, %v946
  %v948 = vrot.slane %v947, 1
  %v949 = vadd.f32 %v947, %v948
  %v950 = vsel %vm619, %v844, 0.0
  %v951 = vrot.slane %v950, 4
  %v952 = vadd.f32 %v950, %v951
  %v953 = vrot.slane %v952, 2
  %v954 = vadd.f32 %v952, %v953
  %v955 = vrot.slane %v954, 1
  %v956 = vadd.f32 %v954, %v955
  %v957 = vld [vmem:[%s7] sm:$0x1]
  %v959 = vlaneseq
  %v960 = vshrl.u32 %v959, 7
  %v961 = vsub.s32 0, %v960
  %v962 = vrot.slane %v957, %v961
  %v964 = vmul.f32 %v851, %v962
  %v965 = vmul.f32 %v858, %v962
  %v966 = vmul.f32 %v865, %v962
  %v967 = vmul.f32 %v872, %v962
  %v968 = vmul.f32 %v879, %v962
  %v969 = vmul.f32 %v886, %v962
  %v970 = vmul.f32 %v893, %v962
  %v971 = vmul.f32 %v900, %v962
  %v972 = vmul.f32 %v907, %v962
  %v973 = vmul.f32 %v914, %v962
  %v974 = vmul.f32 %v921, %v962
  %v975 = vmul.f32 %v928, %v962
  %v976 = vmul.f32 %v935, %v962
  %v977 = vmul.f32 %v942, %v962
  %v978 = vmul.f32 %v949, %v962
  %v979 = vmul.f32 %v956, %v962
  %v996 = vrot.slane %v965, 7
  %vm997 = vcmask 1041409
  %v998 = vsel %vm997, %v996, %v964
  %v999 = vrot.slane %v966, 6
  %vm1000 = vcmask 1042434
  %v1001 = vsel %vm1000, %v999, %v998
  %v1002 = vrot.slane %v967, 5
  %vm1003 = vcmask 1043459
  %v1004 = vsel %vm1003, %v1002, %v1001
  %v1005 = vrot.slane %v968, 4
  %vm1006 = vcmask 1044484
  %v1007 = vsel %vm1006, %v1005, %v1004
  %v1008 = vrot.slane %v969, 3
  %vm1009 = vcmask 1045509
  %v1010 = vsel %vm1009, %v1008, %v1007
  %v1011 = vrot.slane %v970, 2
  %vm1012 = vcmask 1046534
  %v1013 = vsel %vm1012, %v1011, %v1010
  %v1014 = vrot.slane %v971, 1
  %vm1015 = vcmask 1047559
  %v1016 = vsel %vm1015, %v1014, %v1013
  %v1017 = vrot.slane %v973, 7
  %v1018 = vsel %vm997, %v1017, %v972
  %v1019 = vrot.slane %v974, 6
  %v1020 = vsel %vm1000, %v1019, %v1018
  %v1021 = vrot.slane %v975, 5
  %v1022 = vsel %vm1003, %v1021, %v1020
  %v1023 = vrot.slane %v976, 4
  %v1024 = vsel %vm1006, %v1023, %v1022
  %v1025 = vrot.slane %v977, 3
  %v1026 = vsel %vm1009, %v1025, %v1024
  %v1027 = vrot.slane %v978, 2
  %v1028 = vsel %vm1012, %v1027, %v1026
  %v1029 = vrot.slane %v979, 1
  %v1030 = vsel %vm1015, %v1029, %v1028
  %v1033 = vsel %vm619, %v1016, 0.0
  %1034 = vadd.xlane.f32.xlu0 %v1033
  %v1035 = vpop.xlane.xlu0 %1034
  %v1036 = vsel %vm619, %v1030, 0.0
  %1037 = vadd.xlane.f32.xlu0 %v1036
  %v1038 = vpop.xlane.xlu0 %1037
  %v1039 = vld [vmem:[#allocation2] sm:$0x1]
  %v1041 = vlaneseq
  %v1042 = vshrl.u32 %v1041, 7
  %v1043 = vsub.s32 0, %v1042
  %v1044 = vrot.slane %v1039, %v1043
  %v1046 = vadd.f32 %v1035, %v1044
  %v1047 = vadd.f32 %v1038, %v1044
  %vm1048 = vcmask 7168
  %1049 = vst.msk [vmem:[%s9] sm:$0xff] %vm1048, %v1046
  %1050 = vst.msk [vmem:[%s9 + $0x8] sm:$0xff] %vm1048, %v1047
  // Predicated region
  $region38: #{toy_mincut_forward.1} parent=0 // pred_check
    _
  $region39: #{toy_mincut_forward.1} parent=0 // pred_check_branch
    %1052 = sbr.rel (0) target = $region41
  $region40: #{toy_mincut_forward.1} parent=0 // pred_region
    _
  $region41: #{toy_mincut_forward.1} parent=0 // pred_fallthru
    _
  // Predicated region
  $region42: #{toy_mincut_forward.1} parent=0 // pred_check
    _
  $region43: #{toy_mincut_forward.1} parent=0 // pred_check_branch
    %1054 = sbr.rel (0) target = $region45
  $region44: #{toy_mincut_forward.1} parent=0 // pred_region
    _
  $region45: #{toy_mincut_forward.1} parent=0 // pred_fallthru
    _

</llo_original>
